<compile_context>
chip_gen: v6e
topology: v6e:2x2x1
jax: 0.10.0
libtpu: 0.0.40
codegen_flags: <defaults>
</compile_context>

<pallas_src>
import functools

import jax
import jax.numpy as jnp
from jax.experimental import pallas as pl
from jax.experimental.pallas import tpu as pltpu

POOL = 3      # pool_size
KSIZE = 3     # conv kernel size
C1 = 10       # conv1_feat
C2 = 20       # conv2_feat
HID = 30      # hid_lay_size
PEN = 30      # penult_lay_size
LN_EPS = 1e-5

NK = KSIZE * KSIZE      # 9 kernel offsets
C1W = NK * C1           # 90 = width of block-diagonal conv1 output

# Packed parameter buffer layout (row offsets).  Every block starts at a
# multiple of 8 sublanes and lane offset 0, so every in-kernel slice is
# tile-aligned (no relayouts).
_ROW_W1BD = 0        # (81, 90)  block-diagonal conv1 weight
_ROW_W2F = 88        # (90, 20)  conv2 weight
_ROW_WL1 = 184       # (20, 30)  first linear
_ROW_WL2 = 208       # (30, 30)  third linear
_ROW_B1 = 240        # (1, 90)   conv1 bias, tiled over the 9 conv2 offsets
_ROW_B2 = 248        # (1, 20)
_ROW_BL1 = 256       # (1, 30)
_ROW_GAM = 264       # (1, 30)
_ROW_BET = 272       # (1, 30)
_ROW_BL2 = 280       # (1, 30)
_ROW_WC = 288        # (1, 30)
_ROW_BC = 296        # (1, 1)
_PACK_ROWS = 304
_PACK_COLS = 128


def _round_up(n, m):
    return ((n + m - 1) // m) * m


# ----------------------------- Pallas kernel ------------------------------- #
def _stance_kernel(p0_ref, pp_ref, out_ref, *, B, H2, W2, Sp, Lp):
    f32 = jnp.float32
    dot = lambda a, b: jnp.dot(a, b, preferred_element_type=f32)

    # ---- packed parameters: every slice starts at sublane%8==0, lane 0 ----
    w1bd = pp_ref[_ROW_W1BD:_ROW_W1BD + NK * NK, 0:C1W]   # (81, 90)
    w2f = pp_ref[_ROW_W2F:_ROW_W2F + C1W, 0:C2]           # (90, 20)
    wl1 = pp_ref[_ROW_WL1:_ROW_WL1 + C2, 0:HID]           # (20, 30)
    wl2 = pp_ref[_ROW_WL2:_ROW_WL2 + HID, 0:PEN]          # (30, 30)
    b1 = pp_ref[_ROW_B1:_ROW_B1 + 1, 0:C1W]
    b2 = pp_ref[_ROW_B2:_ROW_B2 + 1, 0:C2]
    bl1 = pp_ref[_ROW_BL1:_ROW_BL1 + 1, 0:HID]
    gam = pp_ref[_ROW_GAM:_ROW_GAM + 1, 0:HID]
    bet = pp_ref[_ROW_BET:_ROW_BET + 1, 0:HID]
    bl2 = pp_ref[_ROW_BL2:_ROW_BL2 + 1, 0:PEN]
    wc = pp_ref[_ROW_WC:_ROW_WC + 1, 0:PEN]
    bc = pp_ref[_ROW_BC:_ROW_BC + 1, 0:1]

    # conv1 (block-diagonal over the 9 conv2 kernel offsets): ONE matmul.
    r1 = jnp.maximum(dot(p0_ref[...], w1bd) + b1, 0.0)     # (9*Lp, 90)

    # pool1: tree-max over the 9 pool-window blocks (all slices Lp-aligned,
    # Lp % 8 == 0), dependency depth 4 instead of 8.
    blocks = [r1[k * Lp:(k + 1) * Lp, :] for k in range(NK)]
    while len(blocks) > 1:
        nxt = [jnp.maximum(blocks[i], blocks[i + 1])
               for i in range(0, len(blocks) - 1, 2)]
        if len(blocks) % 2:
            nxt.append(blocks[-1])
        blocks = nxt
    p1e = blocks[0]                                        # (Lp, 90)

    # conv2: ONE matmul (the conv2 shift structure was folded into the im2col
    # column blocks), bias + relu on the VPU.
    r2 = jnp.maximum(dot(p1e, w2f) + b2, 0.0)              # (Lp, 20)

    # pool2 (output is 1x1 per channel): masked per-batch max.  Padded rows
    # (l >= H2*W2) hold relu(...) >= 0 garbage; masking them to 0 is exact
    # because the true per-batch max is itself >= 0.
    rid = jax.lax.broadcasted_iota(jnp.int32, (B, Sp, C2), 1)
    r2m = jnp.where(rid < (H2 * W2), r2.reshape(B, Sp, C2), 0.0)
    flat = jnp.max(r2m, axis=1)                            # (B, C2)

    # first linear + relu + LayerNorm(HID)
    h1 = jnp.maximum(dot(flat, wl1) + bl1, 0.0)
    mu = jnp.mean(h1, axis=-1, keepdims=True)
    var = jnp.mean((h1 - mu) ** 2, axis=-1, keepdims=True)
    h1 = (h1 - mu) * jax.lax.rsqrt(var + LN_EPS) * gam + bet

    # third linear + relu
    h3 = jnp.maximum(dot(h1, wl2) + bl2, 0.0)

    # classifier (N=1) on the VPU (skip the MXU on the serial tail) + stable
    # sigmoid (exp routes to the otherwise idle EUP slot).
    logit = jnp.sum(h3 * wc, axis=-1, keepdims=True) + bc
    z = jnp.exp(-jnp.abs(logit))
    out_ref[...] = jnp.where(logit >= 0.0, 1.0 / (1.0 + z), z / (1.0 + z))


# ----------------------- wrapper glue (pure jnp, jitted) -------------------- #
def _build_p0(x, H1, W1, P1h, P1w, H2, W2, Sp):
    """Doubly-expanded im2col.

    Row k1*(B*Sp) + b*Sp + (m*W2 + n) holds, in column block k2 (width 9),
    the 3x3 conv1 input patch of the conv1 output position that pool-window
    offset k1=(di,dj) contributes to pool1 output (m+kh, n+kw), k2=(kh,kw).
    """
    B = x.shape[0]
    # 3x3 conv1 patches at every conv1 output position: (B, H1, W1, 9)
    p = jnp.stack([x[:, u:u + H1, v:v + W1]
                   for u in range(KSIZE) for v in range(KSIZE)], axis=-1)
    # split conv1 positions into pool1 output (oi, oj) and window offset (di, dj)
    p = p.reshape(B, P1h, POOL, P1w, POOL, NK)        # (b, oi, di, oj, dj, q)
    p = jnp.transpose(p, (2, 4, 0, 1, 3, 5))          # (di, dj, b, oi, oj, q)
    # replicate the pool1 positions that each conv2 offset (kh, kw) reads
    p = jnp.stack([p[:, :, :, kh:kh + H2, kw:kw + W2, :]
                   for kh in range(KSIZE) for kw in range(KSIZE)], axis=5)
    # (di, dj, b, m, n, k2, q) -> (k1, b, l, k2*9+q)
    p = p.reshape(NK, B, H2 * W2, NK * NK)
    p = jnp.pad(p, ((0, 0), (0, 0), (0, Sp - H2 * W2), (0, 0)))
    return p.reshape(NK * B * Sp, NK * NK)


@jax.jit
def stance_classifier_forward(x, packed_params):
    x = x.astype(jnp.float32)
    B, H, W = x.shape
    H1, W1 = H - KSIZE + 1, W - KSIZE + 1                          # conv1 (VALID)
    P1h, P1w = (H1 - POOL) // POOL + 1, (W1 - POOL) // POOL + 1    # pool1
    H2, W2 = P1h - KSIZE + 1, P1w - KSIZE + 1                      # conv2 (VALID)
    P2h, P2w = (H2 - POOL) // POOL + 1, (W2 - POOL) // POOL + 1    # pool2
    assert H1 == POOL * P1h and W1 == POOL * P1w
    assert P2h == 1 and P2w == 1, "module's Linear sizing requires model_dim = 9m+8"

    Sp = _round_up(H2 * W2, 8)     # per-batch row stride, sublane aligned
    Lp = B * Sp
    p0 = _build_p0(x, H1, W1, P1h, P1w, H2, W2, Sp)                # (9*Lp, 81)

    kernel = functools.partial(_stance_kernel, B=B, H2=H2, W2=W2, Sp=Sp, Lp=Lp)
    out = pl.pallas_call(
        kernel,
        out_shape=jax.ShapeDtypeStruct((B, 1), jnp.float32),
        in_specs=[pl.BlockSpec(memory_space=pltpu.MemorySpace.VMEM)] * 2,
        out_specs=pl.BlockSpec(memory_space=pltpu.MemorySpace.VMEM),
    )(p0, packed_params)
    return jnp.squeeze(out)   # torch.squeeze


# --------------------- parameter packing (done ONCE at init) ---------------- #
def _pack_params(w1, b1, w2, b2, wl1, bl1, gamma, beta, wl2, bl2, wc, bc):
    """Pack every weight/bias into one (304, 128) f32 buffer -> one DMA."""
    w1m = w1.reshape(C1, NK).T                                    # (9, C1): [q, c]
    # block-diagonal conv1 weight: W1bd[k2*9+q, k2*C1+c] = w1m[q, c]
    w1bd = (jnp.eye(NK, dtype=jnp.float32)[:, None, :, None]
            * w1m[None, :, None, :]).reshape(NK * NK, C1W)
    # conv2 weight: W2f[(kh*3+kw)*C1 + c, o] = w2[o, c, kh, kw]
    w2f = jnp.transpose(w2, (2, 3, 1, 0)).reshape(C1W, C2)

    buf = jnp.zeros((_PACK_ROWS, _PACK_COLS), jnp.float32)

    def put(b, row, arr):
        arr = jnp.atleast_2d(jnp.asarray(arr, jnp.float32))
        return b.at[row:row + arr.shape[0], 0:arr.shape[1]].set(arr)

    buf = put(buf, _ROW_W1BD, w1bd)
    buf = put(buf, _ROW_W2F, w2f)
    buf = put(buf, _ROW_WL1, wl1.T)
    buf = put(buf, _ROW_WL2, wl2.T)
    buf = put(buf, _ROW_B1, jnp.tile(b1, NK))
    buf = put(buf, _ROW_B2, b2)
    buf = put(buf, _ROW_BL1, bl1)
    buf = put(buf, _ROW_GAM, gamma)
    buf = put(buf, _ROW_BET, beta)
    buf = put(buf, _ROW_BL2, bl2)
    buf = put(buf, _ROW_WC, wc.reshape(-1))
    buf = put(buf, _ROW_BC, bc)
    return buf


# --------------------- deterministic synthetic parameters ------------------ #
def init_params(key):
    ks = jax.random.split(key, 12)
    # PyTorch-shaped weights (Conv2d: (out, in, kh, kw); Linear: (out, in))
    w1 = jax.random.normal(ks[0], (C1, 1, KSIZE, KSIZE), jnp.float32) * 0.25
    b1 = jax.random.normal(ks[1], (C1,), jnp.float32) * 0.1
    w2 = jax.random.normal(ks[2], (C2, C1, KSIZE, KSIZE), jnp.float32) * 0.1
    b2 = jax.random.normal(ks[3], (C2,), jnp.float32) * 0.1
    wl1 = jax.random.normal(ks[4], (HID, C2), jnp.float32) * 0.2
    bl1 = jax.random.normal(ks[5], (HID,), jnp.float32) * 0.1
    gamma = 1.0 + 0.1 * jax.random.normal(ks[6], (HID,), jnp.float32)
    beta = 0.1 * jax.random.normal(ks[7], (HID,), jnp.float32)
    wl2 = jax.random.normal(ks[8], (PEN, HID), jnp.float32) * 0.2
    bl2 = jax.random.normal(ks[9], (PEN,), jnp.float32) * 0.1
    wc = jax.random.normal(ks[10], (1, PEN), jnp.float32) * 0.3
    bc = jax.random.normal(ks[11], (1,), jnp.float32) * 0.1

    torch_like = dict(w1=w1, b1=b1, w2=w2, b2=b2, wl1=wl1, bl1=bl1,
                      gamma=gamma, beta=beta, wl2=wl2, bl2=bl2, wc=wc, bc=bc)
    packed = _pack_params(w1, b1, w2, b2, wl1, bl1, gamma, beta,
                          wl2, bl2, wc, bc)
    return torch_like, packed


# ---------------------- pure-JAX reference (for checking) ------------------ #
def reference_forward(x, P):
    hp = jax.lax.Precision.HIGHEST
    dn = ('NCHW', 'OIHW', 'NCHW')
    y = jax.lax.conv_general_dilated(x[:, None, :, :], P['w1'], (1, 1), 'VALID',
                                     dimension_numbers=dn, precision=hp)
    y = jax.nn.relu(y + P['b1'][None, :, None, None])
    y = jax.lax.reduce_window(y, -jnp.inf, jax.lax.max,
                              (1, 1, POOL, POOL), (1, 1, POOL, POOL), 'VALID')
    y = jax.lax.conv_general_dilated(y, P['w2'], (1, 1), 'VALID',
                                     dimension_numbers=dn, precision=hp)
    y = jax.nn.relu(y + P['b2'][None, :, None, None])
    y = jax.lax.reduce_window(y, -jnp.inf, jax.lax.max,
                              (1, 1, POOL, POOL), (1, 1, POOL, POOL), 'VALID')
    flat = y.reshape(y.shape[0], -1)
    h = jax.nn.relu(jnp.dot(flat, P['wl1'].T, precision=hp) + P['bl1'])
    mu = h.mean(-1, keepdims=True)
    var = ((h - mu) ** 2).mean(-1, keepdims=True)
    h = (h - mu) / jnp.sqrt(var + LN_EPS) * P['gamma'] + P['beta']
    h = jax.nn.relu(jnp.dot(h, P['wl2'].T, precision=hp) + P['bl2'])
    out = jax.nn.sigmoid(jnp.dot(h, P['wc'].T, precision=hp) + P['bc'])
    return jnp.squeeze(out)


if __name__ == "__main__":
    B, H, W = 2, 17, 17          # model_dim = (17, 17): smallest size the module runs at
    key = jax.random.PRNGKey(0)
    kx, kp = jax.random.split(key)
    x = jax.random.normal(kx, (B, H, W), jnp.float32)
    torch_like, packed = init_params(kp)

    out = jax.block_until_ready(stance_classifier_forward(x, packed))
    ref = jax.block_until_ready(reference_forward(x, torch_like))

    assert out.shape == (B,) and ref.shape == (B,)
    assert jnp.allclose(out, ref, atol=2e-3, rtol=2e-3), (out, ref)
    print("KERNEL_OK")
</pallas_src>

<mosaic_0001>
module attributes {stable_mosaic.version = 11 : i64} {
  func.func @_stance_kernel(%arg0: memref<288x81xf32, #tpu.memory_space<vmem>>, %arg1: memref<304x128xf32, #tpu.memory_space<vmem>>, %arg2: memref<2x1xf32, #tpu.memory_space<vmem>>) attributes {dimension_semantics = [], scalar_prefetch = 0 : i64, scratch_operands = 0 : i64, tpu.core_type = #tpu.core_type<tc>} {
    %c0 = arith.constant 0 : index
    %c0_0 = arith.constant 0 : index
    %0 = vector.load %arg1[%c0, %c0_0] : memref<304x128xf32, #tpu.memory_space<vmem>>, vector<81x90xf32>
    %c88 = arith.constant 88 : index
    %c0_1 = arith.constant 0 : index
    %1 = vector.load %arg1[%c88, %c0_1] : memref<304x128xf32, #tpu.memory_space<vmem>>, vector<90x20xf32>
    %c184 = arith.constant 184 : index
    %c0_2 = arith.constant 0 : index
    %2 = vector.load %arg1[%c184, %c0_2] : memref<304x128xf32, #tpu.memory_space<vmem>>, vector<20x30xf32>
    %c208 = arith.constant 208 : index
    %c0_3 = arith.constant 0 : index
    %3 = vector.load %arg1[%c208, %c0_3] : memref<304x128xf32, #tpu.memory_space<vmem>>, vector<30x30xf32>
    %c240 = arith.constant 240 : index
    %c0_4 = arith.constant 0 : index
    %4 = vector.load %arg1[%c240, %c0_4] : memref<304x128xf32, #tpu.memory_space<vmem>>, vector<1x90xf32>
    %c248 = arith.constant 248 : index
    %c0_5 = arith.constant 0 : index
    %5 = vector.load %arg1[%c248, %c0_5] : memref<304x128xf32, #tpu.memory_space<vmem>>, vector<1x20xf32>
    %c256 = arith.constant 256 : index
    %c0_6 = arith.constant 0 : index
    %6 = vector.load %arg1[%c256, %c0_6] : memref<304x128xf32, #tpu.memory_space<vmem>>, vector<1x30xf32>
    %c264 = arith.constant 264 : index
    %c0_7 = arith.constant 0 : index
    %7 = vector.load %arg1[%c264, %c0_7] : memref<304x128xf32, #tpu.memory_space<vmem>>, vector<1x30xf32>
    %c272 = arith.constant 272 : index
    %c0_8 = arith.constant 0 : index
    %8 = vector.load %arg1[%c272, %c0_8] : memref<304x128xf32, #tpu.memory_space<vmem>>, vector<1x30xf32>
    %c280 = arith.constant 280 : index
    %c0_9 = arith.constant 0 : index
    %9 = vector.load %arg1[%c280, %c0_9] : memref<304x128xf32, #tpu.memory_space<vmem>>, vector<1x30xf32>
    %c288 = arith.constant 288 : index
    %c0_10 = arith.constant 0 : index
    %10 = vector.load %arg1[%c288, %c0_10] : memref<304x128xf32, #tpu.memory_space<vmem>>, vector<1x30xf32>
    %c296 = arith.constant 296 : index
    %c0_11 = arith.constant 0 : index
    %11 = vector.load %arg1[%c296, %c0_11] : memref<304x128xf32, #tpu.memory_space<vmem>>, vector<1x1xf32>
    %c0_12 = arith.constant 0 : index
    %c0_13 = arith.constant 0 : index
    %12 = vector.load %arg0[%c0_12, %c0_13] : memref<288x81xf32, #tpu.memory_space<vmem>>, vector<288x81xf32>
    %cst = arith.constant dense<0.000000e+00> : vector<288x90xf32>
    %13 = tpu.matmul %12, %0, %cst {dimension_numbers = #tpu.dot_dimension_numbers<[1], [0], [0], [1], [0, 0, 1, 1], [], []>} : vector<288x81xf32>, vector<81x90xf32>, vector<288x90xf32> -> vector<288x90xf32>
    %14 = vector.broadcast %4 : vector<1x90xf32> to vector<288x90xf32>
    %15 = arith.addf %13, %14 : vector<288x90xf32>
    %cst_14 = arith.constant 0.000000e+00 : f32
    %16 = vector.broadcast %cst_14 : f32 to vector<288x90xf32>
    %17 = arith.maximumf %15, %16 : vector<288x90xf32>
    %18 = vector.extract_strided_slice %17 {offsets = [0, 0], sizes = [32, 90], strides = [1, 1]} : vector<288x90xf32> to vector<32x90xf32>
    %19 = vector.extract_strided_slice %17 {offsets = [32, 0], sizes = [32, 90], strides = [1, 1]} : vector<288x90xf32> to vector<32x90xf32>
    %20 = vector.extract_strided_slice %17 {offsets = [64, 0], sizes = [32, 90], strides = [1, 1]} : vector<288x90xf32> to vector<32x90xf32>
    %21 = vector.extract_strided_slice %17 {offsets = [96, 0], sizes = [32, 90], strides = [1, 1]} : vector<288x90xf32> to vector<32x90xf32>
    %22 = vector.extract_strided_slice %17 {offsets = [128, 0], sizes = [32, 90], strides = [1, 1]} : vector<288x90xf32> to vector<32x90xf32>
    %23 = vector.extract_strided_slice %17 {offsets = [160, 0], sizes = [32, 90], strides = [1, 1]} : vector<288x90xf32> to vector<32x90xf32>
    %24 = vector.extract_strided_slice %17 {offsets = [192, 0], sizes = [32, 90], strides = [1, 1]} : vector<288x90xf32> to vector<32x90xf32>
    %25 = vector.extract_strided_slice %17 {offsets = [224, 0], sizes = [32, 90], strides = [1, 1]} : vector<288x90xf32> to vector<32x90xf32>
    %26 = vector.extract_strided_slice %17 {offsets = [256, 0], sizes = [32, 90], strides = [1, 1]} : vector<288x90xf32> to vector<32x90xf32>
    %27 = arith.maximumf %18, %19 : vector<32x90xf32>
    %28 = arith.maximumf %20, %21 : vector<32x90xf32>
    %29 = arith.maximumf %22, %23 : vector<32x90xf32>
    %30 = arith.maximumf %24, %25 : vector<32x90xf32>
    %31 = arith.maximumf %27, %28 : vector<32x90xf32>
    %32 = arith.maximumf %29, %30 : vector<32x90xf32>
    %33 = arith.maximumf %31, %32 : vector<32x90xf32>
    %34 = arith.maximumf %33, %26 : vector<32x90xf32>
    %cst_15 = arith.constant dense<0.000000e+00> : vector<32x20xf32>
    %35 = tpu.matmul %34, %1, %cst_15 {dimension_numbers = #tpu.dot_dimension_numbers<[1], [0], [0], [1], [0, 0, 1, 1], [], []>} : vector<32x90xf32>, vector<90x20xf32>, vector<32x20xf32> -> vector<32x20xf32>
    %36 = vector.broadcast %5 : vector<1x20xf32> to vector<32x20xf32>
    %37 = arith.addf %35, %36 : vector<32x20xf32>
    %cst_16 = arith.constant 0.000000e+00 : f32
    %38 = vector.broadcast %cst_16 : f32 to vector<32x20xf32>
    %39 = arith.maximumf %37, %38 : vector<32x20xf32>
    %40 = tpu.iota {dimensions = array<i32: 1>} : vector<2x16x20xi32>
    %c9_i32 = arith.constant 9 : i32
    %41 = vector.broadcast %c9_i32 : i32 to vector<2x16x20xi32>
    %42 = arith.cmpi slt, %40, %41 : vector<2x16x20xi32>
    %43 = vector.shape_cast %39 : vector<32x20xf32> to vector<2x16x20xf32>
    %cst_17 = arith.constant 0.000000e+00 : f32
    %44 = vector.broadcast %cst_17 : f32 to vector<2x16x20xf32>
    %45 = arith.select %42, %43, %44 : vector<2x16x20xi1>, vector<2x16x20xf32>
    %cst_18 = arith.constant dense<0xFF800000> : vector<2x20xf32>
    %46 = vector.multi_reduction <maximumf>, %45, %cst_18 [1] : vector<2x16x20xf32> to vector<2x20xf32>
    %cst_19 = arith.constant dense<0.000000e+00> : vector<2x30xf32>
    %47 = tpu.matmul %46, %2, %cst_19 {dimension_numbers = #tpu.dot_dimension_numbers<[1], [0], [0], [1], [0, 0, 1, 1], [], []>} : vector<2x20xf32>, vector<20x30xf32>, vector<2x30xf32> -> vector<2x30xf32>
    %48 = vector.broadcast %6 : vector<1x30xf32> to vector<2x30xf32>
    %49 = arith.addf %47, %48 : vector<2x30xf32>
    %cst_20 = arith.constant 0.000000e+00 : f32
    %50 = vector.broadcast %cst_20 : f32 to vector<2x30xf32>
    %51 = arith.maximumf %49, %50 : vector<2x30xf32>
    %cst_21 = arith.constant dense<0.000000e+00> : vector<2xf32>
    %52 = vector.multi_reduction <add>, %51, %cst_21 [1] : vector<2x30xf32> to vector<2xf32>
    %53 = vector.shape_cast %52 : vector<2xf32> to vector<2x1xf32>
    %cst_22 = arith.constant 3.000000e+01 : f32
    %54 = vector.broadcast %cst_22 : f32 to vector<2x1xf32>
    %55 = arith.divf %53, %54 : vector<2x1xf32>
    %56 = vector.broadcast %55 : vector<2x1xf32> to vector<2x30xf32>
    %57 = arith.subf %51, %56 : vector<2x30xf32>
    %58 = arith.mulf %57, %57 : vector<2x30xf32>
    %cst_23 = arith.constant dense<0.000000e+00> : vector<2xf32>
    %59 = vector.multi_reduction <add>, %58, %cst_23 [1] : vector<2x30xf32> to vector<2xf32>
    %60 = vector.shape_cast %59 : vector<2xf32> to vector<2x1xf32>
    %cst_24 = arith.constant 3.000000e+01 : f32
    %61 = vector.broadcast %cst_24 : f32 to vector<2x1xf32>
    %62 = arith.divf %60, %61 : vector<2x1xf32>
    %63 = vector.broadcast %55 : vector<2x1xf32> to vector<2x30xf32>
    %64 = arith.subf %51, %63 : vector<2x30xf32>
    %cst_25 = arith.constant 9.99999974E-6 : f32
    %65 = vector.broadcast %cst_25 : f32 to vector<2x1xf32>
    %66 = arith.addf %62, %65 : vector<2x1xf32>
    %67 = math.rsqrt %66 : vector<2x1xf32>
    %68 = vector.broadcast %67 : vector<2x1xf32> to vector<2x30xf32>
    %69 = arith.mulf %64, %68 : vector<2x30xf32>
    %70 = vector.broadcast %7 : vector<1x30xf32> to vector<2x30xf32>
    %71 = arith.mulf %69, %70 : vector<2x30xf32>
    %72 = vector.broadcast %8 : vector<1x30xf32> to vector<2x30xf32>
    %73 = arith.addf %71, %72 : vector<2x30xf32>
    %cst_26 = arith.constant dense<0.000000e+00> : vector<2x30xf32>
    %74 = tpu.matmul %73, %3, %cst_26 {dimension_numbers = #tpu.dot_dimension_numbers<[1], [0], [0], [1], [0, 0, 1, 1], [], []>} : vector<2x30xf32>, vector<30x30xf32>, vector<2x30xf32> -> vector<2x30xf32>
    %75 = vector.broadcast %9 : vector<1x30xf32> to vector<2x30xf32>
    %76 = arith.addf %74, %75 : vector<2x30xf32>
    %cst_27 = arith.constant 0.000000e+00 : f32
    %77 = vector.broadcast %cst_27 : f32 to vector<2x30xf32>
    %78 = arith.maximumf %76, %77 : vector<2x30xf32>
    %79 = vector.broadcast %10 : vector<1x30xf32> to vector<2x30xf32>
    %80 = arith.mulf %78, %79 : vector<2x30xf32>
    %cst_28 = arith.constant dense<0.000000e+00> : vector<2xf32>
    %81 = vector.multi_reduction <add>, %80, %cst_28 [1] : vector<2x30xf32> to vector<2xf32>
    %82 = vector.shape_cast %81 : vector<2xf32> to vector<2x1xf32>
    %83 = vector.broadcast %11 : vector<1x1xf32> to vector<2x1xf32>
    %84 = arith.addf %82, %83 : vector<2x1xf32>
    %85 = math.absf %84 : vector<2x1xf32>
    %cst_29 = arith.constant 0.000000e+00 : f32
    %86 = vector.broadcast %cst_29 : f32 to vector<2x1xf32>
    %87 = arith.subf %86, %85 : vector<2x1xf32>
    %88 = math.exp %87 : vector<2x1xf32>
    %cst_30 = arith.constant 0.000000e+00 : f32
    %89 = vector.broadcast %cst_30 : f32 to vector<2x1xf32>
    %90 = arith.cmpf oge, %84, %89 : vector<2x1xf32>
    %cst_31 = arith.constant 1.000000e+00 : f32
    %91 = vector.broadcast %cst_31 : f32 to vector<2x1xf32>
    %92 = arith.addf %91, %88 : vector<2x1xf32>
    %cst_32 = arith.constant 1.000000e+00 : f32
    %93 = vector.broadcast %cst_32 : f32 to vector<2x1xf32>
    %94 = arith.divf %93, %92 : vector<2x1xf32>
    %cst_33 = arith.constant 1.000000e+00 : f32
    %95 = vector.broadcast %cst_33 : f32 to vector<2x1xf32>
    %96 = arith.addf %95, %88 : vector<2x1xf32>
    %97 = arith.divf %88, %96 : vector<2x1xf32>
    %98 = arith.select %90, %94, %97 : vector<2x1xi1>, vector<2x1xf32>
    %c0_34 = arith.constant 0 : index
    %c0_35 = arith.constant 0 : index
    %99 = vector.load %arg2[%c0_34, %c0_35] : memref<2x1xf32, #tpu.memory_space<vmem>>, vector<2x1xf32>
    tpu.vector_store %arg2[%c0_34, %c0_35], %98 {strides = array<i32>} : memref<2x1xf32, #tpu.memory_space<vmem>>, vector<2x1xf32>,
    return
  }
}

</mosaic_0001>

<llo_original>
// kernel: stance_classifier_forward.1
$region0: #{stance_classifier_forward.1}
  #allocation0 [shape = 'u32[]', space=smem, size = 0x4, offset = 0x4, fixed_abs, tag = 'smem constant byte address 0x4 - core index']
  #allocation1 [shape = 'u32[144,128]{1,0:T(1,128)}', space=vmem, size = 0x12000, scoped, tag = 'internal scratch']
  %s0 = inlined_call_operand.vmem [shape: f32[288,81], index: 0, kind: input, shape index: {}]
  %s1 = inlined_call_operand.vmem [shape: f32[304,128], index: 1, kind: input, shape index: {}]
  %s2 = inlined_call_operand.vmem [shape: f32[2,1], index: 2, kind: output, shape index: {}]
  %s3 = sld [smem:[#allocation0]]
  $region18: #{stance_classifier_forward.1} parent=0
    _
  %s5 = ssub.s32 1, %s3
  %s6 = scalar_select 0, %s5, %s3
  // Predicated region
  $region2: #{stance_classifier_forward.1} parent=0 // pred_check
    _
  $region3: #{stance_classifier_forward.1} parent=0 // pred_check_branch
    %8 = sbr.rel (0) target = $region5
  $region4: #{stance_classifier_forward.1} parent=0 // pred_region
    _
  $region5: #{stance_classifier_forward.1} parent=0 // pred_fallthru
    _
  // Predicated region
  $region6: #{stance_classifier_forward.1} parent=0 // pred_check
    _
  $region7: #{stance_classifier_forward.1} parent=0 // pred_check_branch
    %10 = sbr.rel (0) target = $region9
  $region8: #{stance_classifier_forward.1} parent=0 // pred_region
    _
  $region9: #{stance_classifier_forward.1} parent=0 // pred_fallthru
    _
  %v11 = vld [vmem:[%s1] sm:$0xff]
  %v12 = vld [vmem:[%s1 + $0x8] sm:$0xff]
  %v13 = vld [vmem:[%s1 + $0x10] sm:$0xff]
  %v14 = vld [vmem:[%s1 + $0x18] sm:$0xff]
  %v15 = vld [vmem:[%s1 + $0x20] sm:$0xff]
  %v16 = vld [vmem:[%s1 + $0x28] sm:$0xff]
  %v17 = vld [vmem:[%s1 + $0x30] sm:$0xff]
  %v18 = vld [vmem:[%s1 + $0x38] sm:$0xff]
  %v19 = vld [vmem:[%s1 + $0x40] sm:$0xff]
  %v20 = vld [vmem:[%s1 + $0x48] sm:$0xff]
  %v21 = vld [vmem:[%s1 + $0x50] sm:$0x1]
  %v22 = vld [vmem:[%s1 + $0x58] sm:$0xff]
  %v23 = vld [vmem:[%s1 + $0x60] sm:$0xff]
  %v24 = vld [vmem:[%s1 + $0x68] sm:$0xff]
  %v25 = vld [vmem:[%s1 + $0x70] sm:$0xff]
  %v26 = vld [vmem:[%s1 + $0x78] sm:$0xff]
  %v27 = vld [vmem:[%s1 + $0x80] sm:$0xff]
  %v28 = vld [vmem:[%s1 + $0x88] sm:$0xff]
  %v29 = vld [vmem:[%s1 + $0x90] sm:$0xff]
  %v30 = vld [vmem:[%s1 + $0x98] sm:$0xff]
  %v31 = vld [vmem:[%s1 + $0xa0] sm:$0xff]
  %v32 = vld [vmem:[%s1 + $0xa8] sm:$0xff]
  %v33 = vld [vmem:[%s1 + $0xb0] sm:$0x3]
  %v34 = vld [vmem:[%s1 + $0xb8] sm:$0xff]
  %v35 = vld [vmem:[%s1 + $0xc0] sm:$0xff]
  %v36 = vld [vmem:[%s1 + $0xc8] sm:$0xf]
  %v37 = vld [vmem:[%s1 + $0xd0] sm:$0xff]
  %v38 = vld [vmem:[%s1 + $0xd8] sm:$0xff]
  %v39 = vld [vmem:[%s1 + $0xe0] sm:$0xff]
  %v40 = vld [vmem:[%s1 + $0xe8] sm:$0x3f]
  %v41 = vld [vmem:[%s1 + $0xf0] sm:$0x1]
  %v42 = vld [vmem:[%s1 + $0xf8] sm:$0x1]
  %v43 = vld [vmem:[%s1 + $0x100] sm:$0x1]
  %v44 = vld [vmem:[%s1 + $0x108] sm:$0x1]
  %v45 = vld [vmem:[%s1 + $0x110] sm:$0x1]
  %v46 = vld [vmem:[%s1 + $0x118] sm:$0x1]
  %v47 = vld [vmem:[%s1 + $0x120] sm:$0x1]
  %v48 = vld [vmem:[%s1 + $0x128] sm:$0x1]
  %v49 = vld [vmem:[%s0] sm:$0xff]
  %v50 = vld [vmem:[%s0 + $0x8] sm:$0xff]
  %v51 = vld [vmem:[%s0 + $0x10] sm:$0xff]
  %v52 = vld [vmem:[%s0 + $0x18] sm:$0xff]
  %v53 = vld [vmem:[%s0 + $0x20] sm:$0xff]
  %v54 = vld [vmem:[%s0 + $0x28] sm:$0xff]
  %v55 = vld [vmem:[%s0 + $0x30] sm:$0xff]
  %v56 = vld [vmem:[%s0 + $0x38] sm:$0xff]
  %v57 = vld [vmem:[%s0 + $0x40] sm:$0xff]
  %v58 = vld [vmem:[%s0 + $0x48] sm:$0xff]
  %v59 = vld [vmem:[%s0 + $0x50] sm:$0xff]
  %v60 = vld [vmem:[%s0 + $0x58] sm:$0xff]
  %v61 = vld [vmem:[%s0 + $0x60] sm:$0xff]
  %v62 = vld [vmem:[%s0 + $0x68] sm:$0xff]
  %v63 = vld [vmem:[%s0 + $0x70] sm:$0xff]
  %v64 = vld [vmem:[%s0 + $0x78] sm:$0xff]
  %v65 = vld [vmem:[%s0 + $0x80] sm:$0xff]
  %v66 = vld [vmem:[%s0 + $0x88] sm:$0xff]
  %v67 = vld [vmem:[%s0 + $0x90] sm:$0xff]
  %v68 = vld [vmem:[%s0 + $0x98] sm:$0xff]
  %v69 = vld [vmem:[%s0 + $0xa0] sm:$0xff]
  %v70 = vld [vmem:[%s0 + $0xa8] sm:$0xff]
  %v71 = vld [vmem:[%s0 + $0xb0] sm:$0xff]
  %v72 = vld [vmem:[%s0 + $0xb8] sm:$0xff]
  %v73 = vld [vmem:[%s0 + $0xc0] sm:$0xff]
  %v74 = vld [vmem:[%s0 + $0xc8] sm:$0xff]
  %v75 = vld [vmem:[%s0 + $0xd0] sm:$0xff]
  %v76 = vld [vmem:[%s0 + $0xd8] sm:$0xff]
  %v77 = vld [vmem:[%s0 + $0xe0] sm:$0xff]
  %v78 = vld [vmem:[%s0 + $0xe8] sm:$0xff]
  %v79 = vld [vmem:[%s0 + $0xf0] sm:$0xff]
  %v80 = vld [vmem:[%s0 + $0xf8] sm:$0xff]
  %v81 = vld [vmem:[%s0 + $0x100] sm:$0xff]
  %v82 = vld [vmem:[%s0 + $0x108] sm:$0xff]
  %v83 = vld [vmem:[%s0 + $0x110] sm:$0xff]
  %v84 = vld [vmem:[%s0 + $0x118] sm:$0xff]
  %v85 = vlaneseq
  %v86 = vshrl.u32 %v85, 7
  %v87 = vsub.s32 0, %v86
  %v88 = vrot.slane %v41, %v87
  %vm89 = vcmask 662528
  %v91 = vsel %vm89, %v49, 0
  %v94 = vsel %vm89, %v50, 0
  %v97 = vsel %vm89, %v51, 0
  %v100 = vsel %vm89, %v52, 0
  %v103 = vsel %vm89, %v53, 0
  %v106 = vsel %vm89, %v54, 0
  %v109 = vsel %vm89, %v55, 0
  %v112 = vsel %vm89, %v56, 0
  %v115 = vsel %vm89, %v57, 0
  %v118 = vsel %vm89, %v58, 0
  %v121 = vsel %vm89, %v59, 0
  %v124 = vsel %vm89, %v60, 0
  %v127 = vsel %vm89, %v61, 0
  %v130 = vsel %vm89, %v62, 0
  %v133 = vsel %vm89, %v63, 0
  %v136 = vsel %vm89, %v64, 0
  %v139 = vsel %vm89, %v65, 0
  %v142 = vsel %vm89, %v66, 0
  %v145 = vsel %vm89, %v67, 0
  %v148 = vsel %vm89, %v68, 0
  %v151 = vsel %vm89, %v69, 0
  %v154 = vsel %vm89, %v70, 0
  %v157 = vsel %vm89, %v71, 0
  %v160 = vsel %vm89, %v72, 0
  %v163 = vsel %vm89, %v73, 0
  %v166 = vsel %vm89, %v74, 0
  %v169 = vsel %vm89, %v75, 0
  %v172 = vsel %vm89, %v76, 0
  %v175 = vsel %vm89, %v77, 0
  %v178 = vsel %vm89, %v78, 0
  %v181 = vsel %vm89, %v79, 0
  %v184 = vsel %vm89, %v80, 0
  %v187 = vsel %vm89, %v81, 0
  %v190 = vsel %vm89, %v82, 0
  %v193 = vsel %vm89, %v83, 0
  %v196 = vsel %vm89, %v84, 0
  %vm198 = vcmask 1040384
  %v200 = vsel %vm198, %v21, 0
  %202 = vmatprep.subr.mxu0 0.0
  %203 = vmatpush1.msra.mxu0 0.0
  %204 = vmatprep.subr.mxu0 0.0
  %205 = vmatpush1.msra.mxu0 0.0
  %206 = vmatprep.subr.mxu0 0.0
  %207 = vmatpush1.msra.mxu0 0.0
  %208 = vmatprep.subr.mxu0 0.0
  %209 = vmatpush1.msra.mxu0 0.0
  %210 = vmatprep.subr.mxu0 0.0
  %211 = vmatpush1.msra.mxu0 0.0
  %212 = vmatprep.subr.mxu0 0.0
  %213 = vmatpush1.msra.mxu0 %v200
  %214 = vmatprep.subr.mxu0 0.0
  %215 = vmatpush1.msra.mxu0 %v20
  %216 = vmatprep.subr.mxu0 0.0
  %217 = vmatpush1.msra.mxu0 %v19
  %218 = vmatprep.subr.mxu0 0.0
  %219 = vmatpush1.msra.mxu0 %v18
  %220 = vmatprep.subr.mxu0 0.0
  %221 = vmatpush1.msra.mxu0 %v17
  %222 = vmatprep.subr.mxu0 0.0
  %223 = vmatpush1.msra.mxu0 %v16
  %224 = vmatprep.subr.mxu0 0.0
  %225 = vmatpush1.msra.mxu0 %v15
  %226 = vmatprep.subr.mxu0 0.0
  %227 = vmatpush1.msra.mxu0 %v14
  %228 = vmatprep.subr.mxu0 0.0
  %229 = vmatpush1.msra.mxu0 %v13
  %230 = vmatprep.subr.mxu0 0.0
  %231 = vmatpush1.msra.mxu0 %v12
  %232 = vmatprep.subr.mxu0 0.0
  %233 = vmatpush1.msra.mxu0 %v11
  %234 = vmatprep.subr.mxu0 0.0
  %235 = vmatpush2.msra.mxu0 0.0
  %236 = vmatprep.subr.mxu0 0.0
  %237 = vmatpush2.msra.mxu0 0.0
  %238 = vmatprep.subr.mxu0 0.0
  %239 = vmatpush2.msra.mxu0 0.0
  %240 = vmatprep.subr.mxu0 0.0
  %241 = vmatpush2.msra.mxu0 0.0
  %242 = vmatprep.subr.mxu0 0.0
  %243 = vmatpush2.msra.mxu0 0.0
  %244 = vmatprep.subr.mxu0 0.0
  %245 = vmatpush2.msra.mxu0 0.0
  %246 = vmatprep.subr.mxu0 0.0
  %247 = vmatpush2.msra.mxu0 0.0
  %248 = vmatprep.subr.mxu0 0.0
  %249 = vmatpush2.msra.mxu0 0.0
  %250 = vmatprep.subr.mxu0 0.0
  %251 = vmatpush2.msra.mxu0 0.0
  %252 = vmatprep.subr.mxu0 0.0
  %253 = vmatpush2.msra.mxu0 0.0
  %254 = vmatprep.subr.mxu0 0.0
  %255 = vmatpush2.msra.mxu0 0.0
  %256 = vmatprep.subr.mxu0 0.0
  %257 = vmatpush2.msra.mxu0 0.0
  %258 = vmatprep.subr.mxu0 0.0
  %259 = vmatpush2.msra.mxu0 0.0
  %260 = vmatprep.subr.mxu0 0.0
  %261 = vmatpush2.msra.mxu0 0.0
  %262 = vmatprep.subr.mxu0 0.0
  %263 = vmatpush2.msra.mxu0 0.0
  %264 = vmatprep.subr.mxu0 0.0
  %265 = vmatpush2.msra.mxu0 0.0
  %266 = vmatprep.mubr.f32.mxu0 0.0
  %267 = vmatmul.mubr.f32.gmra.mxu0 %v91
  %v268 = vpop.f32.mrf.mxu0
  %v269 = vadd.f32 %v88, %v268
  %v270 = vpop.f32.mrf.mxu0
  %271 = vmatprep.mubr.f32.mxu0 0.0
  %272 = vmatmul.mubr.f32.gmra.mxu0 %v94
  %v273 = vpop.f32.mrf.mxu0
  %v274 = vadd.f32 %v88, %v273
  %v275 = vpop.f32.mrf.mxu0
  %276 = vmatprep.mubr.f32.mxu0 0.0
  %277 = vmatmul.mubr.f32.gmra.mxu0 %v97
  %v278 = vpop.f32.mrf.mxu0
  %v279 = vadd.f32 %v88, %v278
  %v280 = vpop.f32.mrf.mxu0
  %281 = vmatprep.mubr.f32.mxu0 0.0
  %282 = vmatmul.mubr.f32.gmra.mxu0 %v100
  %v283 = vpop.f32.mrf.mxu0
  %v284 = vadd.f32 %v88, %v283
  %v285 = vpop.f32.mrf.mxu0
  %286 = vmatprep.mubr.f32.mxu0 0.0
  %287 = vmatmul.mubr.f32.gmra.mxu0 %v103
  %v288 = vpop.f32.mrf.mxu0
  %v289 = vadd.f32 %v88, %v288
  %v290 = vpop.f32.mrf.mxu0
  %291 = vmatprep.mubr.f32.mxu0 0.0
  %292 = vmatmul.mubr.f32.gmra.mxu0 %v106
  %v293 = vpop.f32.mrf.mxu0
  %v294 = vadd.f32 %v88, %v293
  %v295 = vpop.f32.mrf.mxu0
  %296 = vmatprep.mubr.f32.mxu0 0.0
  %297 = vmatmul.mubr.f32.gmra.mxu0 %v109
  %v298 = vpop.f32.mrf.mxu0
  %v299 = vadd.f32 %v88, %v298
  %v300 = vpop.f32.mrf.mxu0
  %301 = vmatprep.mubr.f32.mxu0 0.0
  %302 = vmatmul.mubr.f32.gmra.mxu0 %v112
  %v303 = vpop.f32.mrf.mxu0
  %v304 = vadd.f32 %v88, %v303
  %v305 = vpop.f32.mrf.mxu0
  %306 = vmatprep.mubr.f32.mxu0 0.0
  %307 = vmatmul.mubr.f32.gmra.mxu0 %v115
  %v308 = vpop.f32.mrf.mxu0
  %v309 = vadd.f32 %v88, %v308
  %v310 = vpop.f32.mrf.mxu0
  %311 = vmatprep.mubr.f32.mxu0 0.0
  %312 = vmatmul.mubr.f32.gmra.mxu0 %v118
  %v313 = vpop.f32.mrf.mxu0
  %v314 = vadd.f32 %v88, %v313
  %v315 = vpop.f32.mrf.mxu0
  %316 = vmatprep.mubr.f32.mxu0 0.0
  %317 = vmatmul.mubr.f32.gmra.mxu0 %v121
  %v318 = vpop.f32.mrf.mxu0
  %v319 = vadd.f32 %v88, %v318
  %v320 = vpop.f32.mrf.mxu0
  %321 = vmatprep.mubr.f32.mxu0 0.0
  %322 = vmatmul.mubr.f32.gmra.mxu0 %v124
  %v323 = vpop.f32.mrf.mxu0
  %v324 = vadd.f32 %v88, %v323
  %v325 = vpop.f32.mrf.mxu0
  %326 = vmatprep.mubr.f32.mxu0 0.0
  %327 = vmatmul.mubr.f32.gmra.mxu0 %v127
  %v328 = vpop.f32.mrf.mxu0
  %v329 = vadd.f32 %v88, %v328
  %v330 = vpop.f32.mrf.mxu0
  %331 = vmatprep.mubr.f32.mxu0 0.0
  %332 = vmatmul.mubr.f32.gmra.mxu0 %v130
  %v333 = vpop.f32.mrf.mxu0
  %v334 = vadd.f32 %v88, %v333
  %v335 = vpop.f32.mrf.mxu0
  %336 = vmatprep.mubr.f32.mxu0 0.0
  %337 = vmatmul.mubr.f32.gmra.mxu0 %v133
  %v338 = vpop.f32.mrf.mxu0
  %v339 = vadd.f32 %v88, %v338
  %v340 = vpop.f32.mrf.mxu0
  %341 = vmatprep.mubr.f32.mxu0 0.0
  %342 = vmatmul.mubr.f32.gmra.mxu0 %v136
  %v343 = vpop.f32.mrf.mxu0
  %v344 = vadd.f32 %v88, %v343
  %v345 = vpop.f32.mrf.mxu0
  %346 = vmatprep.mubr.f32.mxu0 0.0
  %347 = vmatmul.mubr.f32.gmra.mxu0 %v139
  %v348 = vpop.f32.mrf.mxu0
  %v349 = vadd.f32 %v88, %v348
  %v350 = vpop.f32.mrf.mxu0
  %351 = vmatprep.mubr.f32.mxu0 0.0
  %352 = vmatmul.mubr.f32.gmra.mxu0 %v142
  %v353 = vpop.f32.mrf.mxu0
  %v354 = vadd.f32 %v88, %v353
  %v355 = vpop.f32.mrf.mxu0
  %356 = vmatprep.mubr.f32.mxu0 0.0
  %357 = vmatmul.mubr.f32.gmra.mxu0 %v145
  %v358 = vpop.f32.mrf.mxu0
  %v359 = vadd.f32 %v88, %v358
  %v360 = vpop.f32.mrf.mxu0
  %361 = vmatprep.mubr.f32.mxu0 0.0
  %362 = vmatmul.mubr.f32.gmra.mxu0 %v148
  %v363 = vpop.f32.mrf.mxu0
  %v364 = vadd.f32 %v88, %v363
  %v365 = vpop.f32.mrf.mxu0
  %366 = vmatprep.mubr.f32.mxu0 0.0
  %367 = vmatmul.mubr.f32.gmra.mxu0 %v151
  %v368 = vpop.f32.mrf.mxu0
  %v369 = vadd.f32 %v88, %v368
  %v370 = vpop.f32.mrf.mxu0
  %371 = vmatprep.mubr.f32.mxu0 0.0
  %372 = vmatmul.mubr.f32.gmra.mxu0 %v154
  %v373 = vpop.f32.mrf.mxu0
  %v374 = vadd.f32 %v88, %v373
  %v375 = vpop.f32.mrf.mxu0
  %376 = vmatprep.mubr.f32.mxu0 0.0
  %377 = vmatmul.mubr.f32.gmra.mxu0 %v157
  %v378 = vpop.f32.mrf.mxu0
  %v379 = vadd.f32 %v88, %v378
  %v380 = vpop.f32.mrf.mxu0
  %381 = vmatprep.mubr.f32.mxu0 0.0
  %382 = vmatmul.mubr.f32.gmra.mxu0 %v160
  %v383 = vpop.f32.mrf.mxu0
  %v384 = vadd.f32 %v88, %v383
  %v385 = vpop.f32.mrf.mxu0
  %386 = vmatprep.mubr.f32.mxu0 0.0
  %387 = vmatmul.mubr.f32.gmra.mxu0 %v163
  %v388 = vpop.f32.mrf.mxu0
  %v389 = vadd.f32 %v88, %v388
  %v390 = vpop.f32.mrf.mxu0
  %391 = vmatprep.mubr.f32.mxu0 0.0
  %392 = vmatmul.mubr.f32.gmra.mxu0 %v166
  %v393 = vpop.f32.mrf.mxu0
  %v394 = vadd.f32 %v88, %v393
  %v395 = vpop.f32.mrf.mxu0
  %396 = vmatprep.mubr.f32.mxu0 0.0
  %397 = vmatmul.mubr.f32.gmra.mxu0 %v169
  %v398 = vpop.f32.mrf.mxu0
  %v399 = vadd.f32 %v88, %v398
  %v400 = vpop.f32.mrf.mxu0
  %401 = vmatprep.mubr.f32.mxu0 0.0
  %402 = vmatmul.mubr.f32.gmra.mxu0 %v172
  %v403 = vpop.f32.mrf.mxu0
  %v404 = vadd.f32 %v88, %v403
  %v405 = vpop.f32.mrf.mxu0
  %406 = vmatprep.mubr.f32.mxu0 0.0
  %407 = vmatmul.mubr.f32.gmra.mxu0 %v175
  %v408 = vpop.f32.mrf.mxu0
  %v409 = vadd.f32 %v88, %v408
  %v410 = vpop.f32.mrf.mxu0
  %411 = vmatprep.mubr.f32.mxu0 0.0
  %412 = vmatmul.mubr.f32.gmra.mxu0 %v178
  %v413 = vpop.f32.mrf.mxu0
  %v414 = vadd.f32 %v88, %v413
  %v415 = vpop.f32.mrf.mxu0
  %416 = vmatprep.mubr.f32.mxu0 0.0
  %417 = vmatmul.mubr.f32.gmra.mxu0 %v181
  %v418 = vpop.f32.mrf.mxu0
  %v419 = vadd.f32 %v88, %v418
  %v420 = vpop.f32.mrf.mxu0
  %421 = vmatprep.mubr.f32.mxu0 0.0
  %422 = vmatmul.mubr.f32.gmra.mxu0 %v184
  %v423 = vpop.f32.mrf.mxu0
  %v424 = vadd.f32 %v88, %v423
  %v425 = vpop.f32.mrf.mxu0
  %426 = vmatprep.mubr.f32.mxu0 0.0
  %427 = vmatmul.mubr.f32.gmra.mxu0 %v187
  %v428 = vpop.f32.mrf.mxu0
  %v429 = vadd.f32 %v88, %v428
  %v430 = vpop.f32.mrf.mxu0
  %431 = vmatprep.mubr.f32.mxu0 0.0
  %432 = vmatmul.mubr.f32.gmra.mxu0 %v190
  %v433 = vpop.f32.mrf.mxu0
  %v434 = vadd.f32 %v88, %v433
  %v435 = vpop.f32.mrf.mxu0
  %436 = vmatprep.mubr.f32.mxu0 0.0
  %437 = vmatmul.mubr.f32.gmra.mxu0 %v193
  %v438 = vpop.f32.mrf.mxu0
  %v439 = vadd.f32 %v88, %v438
  %v440 = vpop.f32.mrf.mxu0
  %441 = vmatprep.mubr.f32.mxu0 0.0
  %442 = vmatmul.mubr.f32.gmra.mxu0 %v196
  %v443 = vpop.f32.mrf.mxu0
  %v444 = vadd.f32 %v88, %v443
  %v445 = vpop.f32.mrf.mxu0
  %446 = vdwg.mxu0
  %v447 = vmax.f32 %v269, 0.0
  %v448 = vmax.f32 %v274, 0.0
  %v449 = vmax.f32 %v279, 0.0
  %v450 = vmax.f32 %v284, 0.0
  %v451 = vmax.f32 %v289, 0.0
  %v452 = vmax.f32 %v294, 0.0
  %v453 = vmax.f32 %v299, 0.0
  %v454 = vmax.f32 %v304, 0.0
  %v455 = vmax.f32 %v309, 0.0
  %v456 = vmax.f32 %v314, 0.0
  %v457 = vmax.f32 %v319, 0.0
  %v458 = vmax.f32 %v324, 0.0
  %v459 = vmax.f32 %v329, 0.0
  %v460 = vmax.f32 %v334, 0.0
  %v461 = vmax.f32 %v339, 0.0
  %v462 = vmax.f32 %v344, 0.0
  %v463 = vmax.f32 %v349, 0.0
  %v464 = vmax.f32 %v354, 0.0
  %v465 = vmax.f32 %v359, 0.0
  %v466 = vmax.f32 %v364, 0.0
  %v467 = vmax.f32 %v369, 0.0
  %v468 = vmax.f32 %v374, 0.0
  %v469 = vmax.f32 %v379, 0.0
  %v470 = vmax.f32 %v384, 0.0
  %v471 = vmax.f32 %v389, 0.0
  %v472 = vmax.f32 %v394, 0.0
  %v473 = vmax.f32 %v399, 0.0
  %v474 = vmax.f32 %v404, 0.0
  %v475 = vmax.f32 %v409, 0.0
  %v476 = vmax.f32 %v414, 0.0
  %v477 = vmax.f32 %v419, 0.0
  %v478 = vmax.f32 %v424, 0.0
  %v479 = vmax.f32 %v429, 0.0
  %v480 = vmax.f32 %v434, 0.0
  %v481 = vmax.f32 %v439, 0.0
  %v482 = vmax.f32 %v444, 0.0
  %v483 = vmax.f32 %v447, %v451
  %v484 = vmax.f32 %v448, %v452
  %v485 = vmax.f32 %v449, %v453
  %v486 = vmax.f32 %v450, %v454
  %v487 = vmax.f32 %v455, %v459
  %v488 = vmax.f32 %v456, %v460
  %v489 = vmax.f32 %v457, %v461
  %v490 = vmax.f32 %v458, %v462
  %v491 = vmax.f32 %v463, %v467
  %v492 = vmax.f32 %v464, %v468
  %v493 = vmax.f32 %v465, %v469
  %v494 = vmax.f32 %v466, %v470
  %v495 = vmax.f32 %v471, %v475
  %v496 = vmax.f32 %v472, %v476
  %v497 = vmax.f32 %v473, %v477
  %v498 = vmax.f32 %v474, %v478
  %v499 = vmax.f32 %v483, %v487
  %v500 = vmax.f32 %v484, %v488
  %v501 = vmax.f32 %v485, %v489
  %v502 = vmax.f32 %v486, %v490
  %v503 = vmax.f32 %v491, %v495
  %v504 = vmax.f32 %v492, %v496
  %v505 = vmax.f32 %v493, %v497
  %v506 = vmax.f32 %v494, %v498
  %v507 = vmax.f32 %v499, %v503
  %v508 = vmax.f32 %v500, %v504
  %v509 = vmax.f32 %v501, %v505
  %v510 = vmax.f32 %v502, %v506
  %v511 = vmax.f32 %v507, %v479
  %v512 = vmax.f32 %v508, %v480
  %v513 = vmax.f32 %v509, %v481
  %v514 = vmax.f32 %v510, %v482
  %v515 = vlaneseq
  %v516 = vshrl.u32 %v515, 7
  %v517 = vsub.s32 0, %v516
  %v518 = vrot.slane %v42, %v517
  %vm519 = vcmask 736256
  %v521 = vsel %vm519, %v511, 0
  %v524 = vsel %vm519, %v512, 0
  %v527 = vsel %vm519, %v513, 0
  %v530 = vsel %vm519, %v514, 0
  %vm532 = vcmask 1041408
  %v534 = vsel %vm532, %v33, 0
  %536 = vmatprep.subr.mxu0 0.0
  %537 = vmatpush1.msra.mxu0 0.0
  %538 = vmatprep.subr.mxu0 0.0
  %539 = vmatpush1.msra.mxu0 0.0
  %540 = vmatprep.subr.mxu0 0.0
  %541 = vmatpush1.msra.mxu0 0.0
  %542 = vmatprep.subr.mxu0 0.0
  %543 = vmatpush1.msra.mxu0 0.0
  %544 = vmatprep.subr.mxu0 0.0
  %545 = vmatpush1.msra.mxu0 %v534
  %546 = vmatprep.subr.mxu0 0.0
  %547 = vmatpush1.msra.mxu0 %v32
  %548 = vmatprep.subr.mxu0 0.0
  %549 = vmatpush1.msra.mxu0 %v31
  %550 = vmatprep.subr.mxu0 0.0
  %551 = vmatpush1.msra.mxu0 %v30
  %552 = vmatprep.subr.mxu0 0.0
  %553 = vmatpush1.msra.mxu0 %v29
  %554 = vmatprep.subr.mxu0 0.0
  %555 = vmatpush1.msra.mxu0 %v28
  %556 = vmatprep.subr.mxu0 0.0
  %557 = vmatpush1.msra.mxu0 %v27
  %558 = vmatprep.subr.mxu0 0.0
  %559 = vmatpush1.msra.mxu0 %v26
  %560 = vmatprep.subr.mxu0 0.0
  %561 = vmatpush1.msra.mxu0 %v25
  %562 = vmatprep.subr.mxu0 0.0
  %563 = vmatpush1.msra.mxu0 %v24
  %564 = vmatprep.subr.mxu0 0.0
  %565 = vmatpush1.msra.mxu0 %v23
  %566 = vmatprep.subr.mxu0 0.0
  %567 = vmatpush1.msra.mxu0 %v22
  %568 = vmatprep.subr.mxu0 0.0
  %569 = vmatpush2.msra.mxu0 0.0
  %570 = vmatprep.subr.mxu0 0.0
  %571 = vmatpush2.msra.mxu0 0.0
  %572 = vmatprep.subr.mxu0 0.0
  %573 = vmatpush2.msra.mxu0 0.0
  %574 = vmatprep.subr.mxu0 0.0
  %575 = vmatpush2.msra.mxu0 0.0
  %576 = vmatprep.subr.mxu0 0.0
  %577 = vmatpush2.msra.mxu0 0.0
  %578 = vmatprep.subr.mxu0 0.0
  %579 = vmatpush2.msra.mxu0 0.0
  %580 = vmatprep.subr.mxu0 0.0
  %581 = vmatpush2.msra.mxu0 0.0
  %582 = vmatprep.subr.mxu0 0.0
  %583 = vmatpush2.msra.mxu0 0.0
  %584 = vmatprep.subr.mxu0 0.0
  %585 = vmatpush2.msra.mxu0 0.0
  %586 = vmatprep.subr.mxu0 0.0
  %587 = vmatpush2.msra.mxu0 0.0
  %588 = vmatprep.subr.mxu0 0.0
  %589 = vmatpush2.msra.mxu0 0.0
  %590 = vmatprep.subr.mxu0 0.0
  %591 = vmatpush2.msra.mxu0 0.0
  %592 = vmatprep.subr.mxu0 0.0
  %593 = vmatpush2.msra.mxu0 0.0
  %594 = vmatprep.subr.mxu0 0.0
  %595 = vmatpush2.msra.mxu0 0.0
  %596 = vmatprep.subr.mxu0 0.0
  %597 = vmatpush2.msra.mxu0 0.0
  %598 = vmatprep.subr.mxu0 0.0
  %599 = vmatpush2.msra.mxu0 0.0
  %600 = vmatprep.mubr.f32.mxu0 0.0
  %601 = vmatmul.mubr.f32.gmra.mxu0 %v521
  %v602 = vpop.f32.mrf.mxu0
  %v603 = vadd.f32 %v518, %v602
  %v604 = vpop.f32.mrf.mxu0
  %605 = vmatprep.mubr.f32.mxu0 0.0
  %606 = vmatmul.mubr.f32.gmra.mxu0 %v524
  %v607 = vpop.f32.mrf.mxu0
  %v608 = vadd.f32 %v518, %v607
  %v609 = vpop.f32.mrf.mxu0
  %610 = vmatprep.mubr.f32.mxu0 0.0
  %611 = vmatmul.mubr.f32.gmra.mxu0 %v527
  %v612 = vpop.f32.mrf.mxu0
  %v613 = vadd.f32 %v518, %v612
  %v614 = vpop.f32.mrf.mxu0
  %615 = vmatprep.mubr.f32.mxu0 0.0
  %616 = vmatmul.mubr.f32.gmra.mxu0 %v530
  %v617 = vpop.f32.mrf.mxu0
  %v618 = vadd.f32 %v518, %v617
  %v619 = vpop.f32.mrf.mxu0
  %620 = vdwg.mxu0
  %v621 = vmax.f32 %v603, 0.0
  %v622 = vmax.f32 %v608, 0.0
  %v623 = vmax.f32 %v613, 0.0
  %v624 = vmax.f32 %v618, 0.0
  %v625 = vlaneseq
  %v626 = vshrl.u32 %v625, 7
  %v627 = vadd.s32 %v626, 8
  %vm628 = vcmp.lt.s32.totalorder %v626, 9
  %vm629 = vcmp.lt.s32.totalorder %v627, 9
  %v630 = vsel %vm628, %v621, 0.0
  %v631 = vsel %vm629, %v622, 0.0
  %v632 = vsel %vm628, %v623, 0.0
  %v633 = vsel %vm629, %v624, 0.0
  %vm634 = vcmask 162816
  %v635 = vsel %vm634, %v630, -inf
  %v636 = vsel %vm634, %v631, -inf
  %v637 = vmax.f32 %v635, %v636
  %v638 = vrot.slane %v637, 4
  %v639 = vmax.f32 %v637, %v638
  %v640 = vrot.slane %v639, 2
  %v641 = vmax.f32 %v639, %v640
  %v642 = vrot.slane %v641, 1
  %v643 = vmax.f32 %v641, %v642
  %v644 = vsel %vm634, %v632, -inf
  %v645 = vsel %vm634, %v633, -inf
  %v646 = vmax.f32 %v644, %v645
  %v647 = vrot.slane %v646, 4
  %v648 = vmax.f32 %v646, %v647
  %v649 = vrot.slane %v648, 2
  %v650 = vmax.f32 %v648, %v649
  %v651 = vrot.slane %v650, 1
  %v652 = vmax.f32 %v650, %v651
  %v653 = vlaneseq
  %v654 = vshrl.u32 %v653, 7
  %v655 = vsub.s32 0, %v654
  %v656 = vrot.slane %v43, %v655
  %vm659 = vcmask 1041409
  %v660 = vsel %vm659, %v652, %v643
  %v661 = vsel %vm634, %v660, 0
  %vm663 = vcmask 1043456
  %v665 = vsel %vm663, %v36, 0
  %667 = vmatprep.subr.mxu0 0.0
  %668 = vmatpush1.msra.mxu0 0.0
  %669 = vmatprep.subr.mxu0 0.0
  %670 = vmatpush1.msra.mxu0 0.0
  %671 = vmatprep.subr.mxu0 0.0
  %672 = vmatpush1.msra.mxu0 0.0
  %673 = vmatprep.subr.mxu0 0.0
  %674 = vmatpush1.msra.mxu0 0.0
  %675 = vmatprep.subr.mxu0 0.0
  %676 = vmatpush1.msra.mxu0 0.0
  %677 = vmatprep.subr.mxu0 0.0
  %678 = vmatpush1.msra.mxu0 0.0
  %679 = vmatprep.subr.mxu0 0.0
  %680 = vmatpush1.msra.mxu0 0.0
  %681 = vmatprep.subr.mxu0 0.0
  %682 = vmatpush1.msra.mxu0 0.0
  %683 = vmatprep.subr.mxu0 0.0
  %684 = vmatpush1.msra.mxu0 0.0
  %685 = vmatprep.subr.mxu0 0.0
  %686 = vmatpush1.msra.mxu0 0.0
  %687 = vmatprep.subr.mxu0 0.0
  %688 = vmatpush1.msra.mxu0 0.0
  %689 = vmatprep.subr.mxu0 0.0
  %690 = vmatpush1.msra.mxu0 0.0
  %691 = vmatprep.subr.mxu0 0.0
  %692 = vmatpush1.msra.mxu0 0.0
  %693 = vmatprep.subr.mxu0 0.0
  %694 = vmatpush1.msra.mxu0 %v665
  %695 = vmatprep.subr.mxu0 0.0
  %696 = vmatpush1.msra.mxu0 %v35
  %697 = vmatprep.subr.mxu0 0.0
  %698 = vmatpush1.msra.mxu0 %v34
  %699 = vmatprep.subr.mxu0 0.0
  %700 = vmatpush2.msra.mxu0 0.0
  %701 = vmatprep.subr.mxu0 0.0
  %702 = vmatpush2.msra.mxu0 0.0
  %703 = vmatprep.subr.mxu0 0.0
  %704 = vmatpush2.msra.mxu0 0.0
  %705 = vmatprep.subr.mxu0 0.0
  %706 = vmatpush2.msra.mxu0 0.0
  %707 = vmatprep.subr.mxu0 0.0
  %708 = vmatpush2.msra.mxu0 0.0
  %709 = vmatprep.subr.mxu0 0.0
  %710 = vmatpush2.msra.mxu0 0.0
  %711 = vmatprep.subr.mxu0 0.0
  %712 = vmatpush2.msra.mxu0 0.0
  %713 = vmatprep.subr.mxu0 0.0
  %714 = vmatpush2.msra.mxu0 0.0
  %715 = vmatprep.subr.mxu0 0.0
  %716 = vmatpush2.msra.mxu0 0.0
  %717 = vmatprep.subr.mxu0 0.0
  %718 = vmatpush2.msra.mxu0 0.0
  %719 = vmatprep.subr.mxu0 0.0
  %720 = vmatpush2.msra.mxu0 0.0
  %721 = vmatprep.subr.mxu0 0.0
  %722 = vmatpush2.msra.mxu0 0.0
  %723 = vmatprep.subr.mxu0 0.0
  %724 = vmatpush2.msra.mxu0 0.0
  %725 = vmatprep.subr.mxu0 0.0
  %726 = vmatpush2.msra.mxu0 0.0
  %727 = vmatprep.subr.mxu0 0.0
  %728 = vmatpush2.msra.mxu0 0.0
  %729 = vmatprep.subr.mxu0 0.0
  %730 = vmatpush2.msra.mxu0 0.0
  %731 = vmatprep.mubr.f32.mxu0 0.0
  %732 = vmatmul.mubr.f32.gmra.mxu0 %v661
  %v733 = vpop.f32.mrf.mxu0
  %v734 = vadd.f32 %v656, %v733
  %v735 = vpop.f32.mrf.mxu0
  %736 = vdwg.mxu0
  %v737 = vmax.f32 %v734, 0.0
  %vm738 = vcmask 238592
  %v739 = vsel %vm738, %v737, 0.0
  %740 = vadd.xlane.f32.xlu0 %v739
  %v741 = vpop.xlane.xlu0 %740
  %v742 = vrcp.pop 30.0
  %v743 = vmul.f32 %v741, %v742
  %v744 = vsub.f32 %v737, %v743
  %v745 = vmul.f32 %v744, %v744
  %v746 = vsel %vm738, %v745, 0.0
  %747 = vadd.xlane.f32.xlu0 %v746
  %v748 = vpop.xlane.xlu0 %747
  %v749 = vmul.f32 %v748, %v742
  %v750 = vadd.f32 %v749, 1e-05
  %v751 = vrsqrt.pop %v750
  %v752 = vmul.f32 %v744, %v751
  %v753 = vlaneseq
  %v754 = vshrl.u32 %v753, 7
  %v755 = vsub.s32 0, %v754
  %v756 = vrot.slane %v44, %v755
  %v757 = vmul.f32 %v752, %v756
  %v758 = vlaneseq
  %v759 = vshrl.u32 %v758, 7
  %v760 = vsub.s32 0, %v759
  %v761 = vrot.slane %v45, %v760
  %v762 = vadd.f32 %v757, %v761
  %v763 = vlaneseq
  %v764 = vshrl.u32 %v763, 7
  %v765 = vsub.s32 0, %v764
  %v766 = vrot.slane %v46, %v765
  %vm767 = vcmask 244736
  %v769 = vsel %vm767, %v762, 0
  %vm771 = vcmask 1045504
  %v773 = vsel %vm771, %v40, 0
  %775 = vmatprep.subr.mxu0 0.0
  %776 = vmatpush1.msra.mxu0 0.0
  %777 = vmatprep.subr.mxu0 0.0
  %778 = vmatpush1.msra.mxu0 0.0
  %779 = vmatprep.subr.mxu0 0.0
  %780 = vmatpush1.msra.mxu0 0.0
  %781 = vmatprep.subr.mxu0 0.0
  %782 = vmatpush1.msra.mxu0 0.0
  %783 = vmatprep.subr.mxu0 0.0
  %784 = vmatpush1.msra.mxu0 0.0
  %785 = vmatprep.subr.mxu0 0.0
  %786 = vmatpush1.msra.mxu0 0.0
  %787 = vmatprep.subr.mxu0 0.0
  %788 = vmatpush1.msra.mxu0 0.0
  %789 = vmatprep.subr.mxu0 0.0
  %790 = vmatpush1.msra.mxu0 0.0
  %791 = vmatprep.subr.mxu0 0.0
  %792 = vmatpush1.msra.mxu0 0.0
  %793 = vmatprep.subr.mxu0 0.0
  %794 = vmatpush1.msra.mxu0 0.0
  %795 = vmatprep.subr.mxu0 0.0
  %796 = vmatpush1.msra.mxu0 0.0
  %797 = vmatprep.subr.mxu0 0.0
  %798 = vmatpush1.msra.mxu0 0.0
  %799 = vmatprep.subr.mxu0 0.0
  %800 = vmatpush1.msra.mxu0 %v773
  %801 = vmatprep.subr.mxu0 0.0
  %802 = vmatpush1.msra.mxu0 %v39
  %803 = vmatprep.subr.mxu0 0.0
  %804 = vmatpush1.msra.mxu0 %v38
  %805 = vmatprep.subr.mxu0 0.0
  %806 = vmatpush1.msra.mxu0 %v37
  %807 = vmatprep.subr.mxu0 0.0
  %808 = vmatpush2.msra.mxu0 0.0
  %809 = vmatprep.subr.mxu0 0.0
  %810 = vmatpush2.msra.mxu0 0.0
  %811 = vmatprep.subr.mxu0 0.0
  %812 = vmatpush2.msra.mxu0 0.0
  %813 = vmatprep.subr.mxu0 0.0
  %814 = vmatpush2.msra.mxu0 0.0
  %815 = vmatprep.subr.mxu0 0.0
  %816 = vmatpush2.msra.mxu0 0.0
  %817 = vmatprep.subr.mxu0 0.0
  %818 = vmatpush2.msra.mxu0 0.0
  %819 = vmatprep.subr.mxu0 0.0
  %820 = vmatpush2.msra.mxu0 0.0
  %821 = vmatprep.subr.mxu0 0.0
  %822 = vmatpush2.msra.mxu0 0.0
  %823 = vmatprep.subr.mxu0 0.0
  %824 = vmatpush2.msra.mxu0 0.0
  %825 = vmatprep.subr.mxu0 0.0
  %826 = vmatpush2.msra.mxu0 0.0
  %827 = vmatprep.subr.mxu0 0.0
  %828 = vmatpush2.msra.mxu0 0.0
  %829 = vmatprep.subr.mxu0 0.0
  %830 = vmatpush2.msra.mxu0 0.0
  %831 = vmatprep.subr.mxu0 0.0
  %832 = vmatpush2.msra.mxu0 0.0
  %833 = vmatprep.subr.mxu0 0.0
  %834 = vmatpush2.msra.mxu0 0.0
  %835 = vmatprep.subr.mxu0 0.0
  %836 = vmatpush2.msra.mxu0 0.0
  %837 = vmatprep.subr.mxu0 0.0
  %838 = vmatpush2.msra.mxu0 0.0
  %839 = vmatprep.mubr.f32.mxu0 0.0
  %840 = vmatmul.mubr.f32.gmra.mxu0 %v769
  %v841 = vpop.f32.mrf.mxu0
  %v842 = vadd.f32 %v766, %v841
  %v843 = vpop.f32.mrf.mxu0
  %844 = vdwg.mxu0
  %v845 = vmax.f32 %v842, 0.0
  %v846 = vlaneseq
  %v847 = vshrl.u32 %v846, 7
  %v848 = vsub.s32 0, %v847
  %v849 = vrot.slane %v47, %v848
  %v850 = vmul.f32 %v845, %v849
  %v851 = vsel %vm738, %v850, 0.0
  %852 = vadd.xlane.f32.xlu0 %v851
  %v853 = vpop.xlane.xlu0 %852
  %v854 = vlaneseq
  %v855 = vshrl.u32 %v854, 7
  %v856 = vsub.s32 0, %v855
  %v857 = vrot.slane %v48, %v856
  %v858 = vadd.f32 %v853, %v857
  %v859 = vand.u32 2147483647, %v858
  %v860 = vsub.f32 0.0, %v859
  %v861 = vmul.f32 %v860, 1.442695
  %v862 = vpow.pop %v861
  %vm863 = vcmp.ge.f32.partialorder %v858, 0.0
  %v864 = vadd.f32 %v862, 1.0
  %v865 = vrcp.pop %v864
  %v866 = vmul.f32 1.0, %v865
  %v867 = vmul.f32 %v862, %v865
  %v868 = vsel %vm863, %v866, %v867
  %vm869 = vcmask 1024
  %870 = vst.msk [vmem:[%s2] sm:$0x3] %vm869, %v868
  // Predicated region
  $region10: #{stance_classifier_forward.1} parent=0 // pred_check
    _
  $region11: #{stance_classifier_forward.1} parent=0 // pred_check_branch
    %872 = sbr.rel (0) target = $region13
  $region12: #{stance_classifier_forward.1} parent=0 // pred_region
    _
  $region13: #{stance_classifier_forward.1} parent=0 // pred_fallthru
    _
  // Predicated region
  $region14: #{stance_classifier_forward.1} parent=0 // pred_check
    _
  $region15: #{stance_classifier_forward.1} parent=0 // pred_check_branch
    %874 = sbr.rel (0) target = $region17
  $region16: #{stance_classifier_forward.1} parent=0 // pred_region
    _
  $region17: #{stance_classifier_forward.1} parent=0 // pred_fallthru
    _

</llo_original>
